<compile_context>
chip_gen: v5e
topology: v5e:2x2
jax: 0.10.0
libtpu: 0.0.40
codegen_flags: <defaults>
</compile_context>

<pallas_src>
import functools

import jax
import jax.numpy as jnp
from jax import lax
from jax.experimental import pallas as pl
from jax.experimental.pallas import tpu as pltpu


_VMEM_LIMIT = 32 * 1024 * 1024  # scoped-VMEM request; safe on v5e/v6e/v7x


# ----------------------------------------------------------------------------
# Kernel 1: column-wise L2 normalization of the bank (feature axis = axis 0)
# ----------------------------------------------------------------------------
def _normalize_kernel(x_ref, o_ref):
    x = x_ref[...].astype(jnp.float32)
    sq = jnp.sum(x * x, axis=0, keepdims=True)             # (1, tile)  XLU
    # F.normalize: x / max(||x||, eps)  ==  x * rsqrt(max(sq, eps**2))
    inv = lax.rsqrt(jnp.maximum(sq, 1e-24))                 # EUP, frees VALU
    o_ref[...] = (x * inv).astype(o_ref.dtype)


def _pick_lane_tile(size, dim, *, itemsize=4, budget_bytes=12 << 20, cap=4096):
    """Largest multiple-of-128 divisor of `size` whose double-buffered
    (in + out) blocks fit the VMEM budget.  Conservative enough for v7x's
    smaller VMEM while big enough to stay near the HBM roofline."""
    if size % 128 != 0:
        return size                      # tiny bank: one full-width block
    best, t = 128, 128
    hi = min(cap, size)
    while t <= hi:
        if size % t == 0 and 4 * dim * t * itemsize <= budget_bytes:
            best = t
        t += 128
    return best


def normalize_bank(bank):
    dim, size = bank.shape
    tile = _pick_lane_tile(size, dim)
    return pl.pallas_call(
        _normalize_kernel,
        out_shape=jax.ShapeDtypeStruct((dim, size), bank.dtype),
        grid_spec=pltpu.PrefetchScalarGridSpec(
            num_scalar_prefetch=0,
            grid=(size // tile,),
            in_specs=[pl.BlockSpec((dim, tile), lambda j: (0, j))],
            out_specs=pl.BlockSpec((dim, tile), lambda j: (0, j)),
        ),
        compiler_params=pltpu.CompilerParams(
            dimension_semantics=("parallel",),   # shards across TCs on v7x
            vmem_limit_bytes=_VMEM_LIMIT),
    )(bank)


# ----------------------------------------------------------------------------
# Kernel 2: dequeue-and-enqueue (write batch.T into bank[:, ptr:ptr+k])
# ----------------------------------------------------------------------------
def _enqueue_kernel(ptr_ref, batch_t_ref, bank_ref, out_ref, *, size, tile):
    bsz = batch_t_ref.shape[1]
    num_tiles = size // tile

    ptr = ptr_ref[0]
    # Absolute lane-tile processed by this grid step; must mirror the
    # index_map (including its clamp).
    tile_idx = jnp.minimum(ptr // tile + pl.program_id(0), num_tiles - 1)
    c0 = tile_idx * tile

    # Number of columns actually written (torch wrap-around truncation).
    k = jnp.where(ptr + bsz >= size, size - ptr, bsz).astype(jnp.int32)

    # rel[t] = absolute column (c0 + t) - ptr == batch row landing in lane t.
    rel_lane = lax.broadcasted_iota(jnp.int32, (1, tile), 1) + c0 - ptr
    rel = lax.broadcasted_iota(jnp.int32, (bsz, tile), 1) + c0 - ptr
    row = lax.broadcasted_iota(jnp.int32, (bsz, tile), 0)

    # One-hot scatter matrix -> single MXU matmul instead of a bsz-deep
    # unrolled masked-select loop on the VPU.  HIGHEST keeps the copy exact.
    onehot = (row == rel).astype(jnp.float32)                       # (bsz, tile)
    gathered = jnp.dot(batch_t_ref[...].astype(jnp.float32), onehot,
                       preferred_element_type=jnp.float32,
                       precision=lax.Precision.HIGHEST)             # (dim, tile)

    write_mask = (rel_lane >= 0) & (rel_lane < k)                   # (1, tile)
    out_ref[...] = jnp.where(
        write_mask, gathered, bank_ref[...].astype(jnp.float32)
    ).astype(out_ref.dtype)


def enqueue(bank, batch, ptr, *, tile=128):
    """Functional _dequeue_and_enqueue: returns (new_bank, new_ptr)."""
    dim, size = bank.shape
    bsz = batch.shape[0]
    if size % tile != 0:
        tile = size                      # tiny bank: one full-width tile
    num_tiles = size // tile
    # Only the tiles that can receive writes are visited; everything else
    # stays untouched in HBM thanks to input_output_aliases.
    grid = min(pl.cdiv(bsz, tile) + 1, num_tiles)

    ptr_arr = jnp.asarray(ptr, jnp.int32).reshape((1,))
    batch_t = batch.T                    # (dim, bsz): dim on sublanes like bank

    def bank_map(j, ptr_ref):
        return (0, jnp.minimum(ptr_ref[0] // tile + j, num_tiles - 1))

    kernel = functools.partial(_enqueue_kernel, size=size, tile=tile)
    new_bank = pl.pallas_call(
        kernel,
        out_shape=jax.ShapeDtypeStruct((dim, size), bank.dtype),
        grid_spec=pltpu.PrefetchScalarGridSpec(
            num_scalar_prefetch=1,
            grid=(grid,),
            in_specs=[
                pl.BlockSpec((dim, bsz), lambda j, p: (0, 0)),   # batch.T (full)
                pl.BlockSpec((dim, tile), bank_map),             # touched tile
            ],
            out_specs=pl.BlockSpec((dim, tile), bank_map),
        ),
        # Flat inputs (incl. scalar prefetch): 0=ptr, 1=batch_t, 2=bank.
        input_output_aliases={2: 0},
        compiler_params=pltpu.CompilerParams(
            dimension_semantics=("arbitrary",),
            vmem_limit_bytes=_VMEM_LIMIT),
    )(ptr_arr, batch_t, bank)

    ptr_i = jnp.asarray(ptr, jnp.int32)
    new_ptr = jnp.where(ptr_i + bsz >= size, jnp.int32(0), ptr_i + bsz)
    return new_bank, new_ptr


# ----------------------------------------------------------------------------
# Module-equivalent wrapper (functional state: bank, bank_ptr)
# ----------------------------------------------------------------------------
class MemoryBankModule:
    """JAX/Pallas equivalent of lightly's MemoryBankModule."""

    def __init__(self, size: int = 2 ** 16):
        if size < 0:
            raise ValueError(
                f"Illegal memory bank size {size}, must be non-negative.")
        self.size = size
        self.bank = None
        self.bank_ptr = None

    def _init_memory_bank(self, dim: int):
        # torch.randn(dim, size) -> deterministic JAX equivalent.
        key = jax.random.PRNGKey(42)
        raw = jax.random.normal(key, (dim, self.size), jnp.float32)
        self.bank = normalize_bank(raw)            # Pallas kernel
        self.bank_ptr = jnp.int32(0)

    def forward(self, output, labels=None, update: bool = False):
        if self.size == 0:
            return output, None
        _, dim = output.shape
        if self.bank is None:
            self._init_memory_bank(dim)
        bank_snapshot = self.bank  # clone().detach(): arrays are immutable
        if update:
            self.bank, self.bank_ptr = enqueue(
                self.bank, output, self.bank_ptr)  # Pallas kernel
        return output, bank_snapshot

    __call__ = forward


if __name__ == "__main__":
    # Small deterministic example: batch=8, dim=32, memory bank size=256.
    key = jax.random.PRNGKey(0)
    B, D, SIZE = 8, 32, 256

    x = jax.random.normal(key, (B, D), jnp.float32)

    mod = MemoryBankModule(size=SIZE)

    # First forward: initializes + normalizes the bank, returns pre-update
    # snapshot, then enqueues the batch.
    out1, bank1 = mod(x, update=True)
    # Second forward: bank now contains the enqueued batch at columns [0, B).
    out2, bank2 = mod(x, update=False)

    jax.block_until_ready((out1, bank1, out2, bank2, mod.bank, mod.bank_ptr))

    # Sanity checks.
    norms = jnp.linalg.norm(bank1, axis=0)
    assert jnp.allclose(norms, jnp.ones_like(norms), atol=1e-4)
    # Enqueued columns hold the batch (transposed).
    assert jnp.allclose(bank2[:, :B], x.T, rtol=1e-5, atol=1e-5)
    # Untouched columns preserved from the pre-update snapshot.
    assert jnp.allclose(bank2[:, B:], bank1[:, B:], rtol=0.0, atol=1e-6)
    assert int(mod.bank_ptr) == B
    assert bool(jnp.all(out1 == x))

    print("KERNEL_OK")
</pallas_src>

<mosaic_0001>
module attributes {stable_mosaic.version = 11 : i64} {
  func.func @_normalize_kernel(%arg0: i32, %arg1: memref<32x256xf32, #tpu.memory_space<vmem>>, %arg2: memref<32x256xf32, #tpu.memory_space<vmem>>) attributes {dimension_semantics = [#tpu.dimension_semantics<parallel>], iteration_bounds = array<i64: 1>, scalar_prefetch = 0 : i64, scratch_operands = 0 : i64, tpu.core_type = #tpu.core_type<tc>, window_params = [{transform_indices = @transform_0, window_bounds = array<i64: 32, 256>}, {transform_indices = @transform_1, window_bounds = array<i64: 32, 256>}]} {
    %c0 = arith.constant 0 : index
    %c0_0 = arith.constant 0 : index
    %0 = vector.load %arg1[%c0, %c0_0] : memref<32x256xf32, #tpu.memory_space<vmem>>, vector<32x256xf32>
    %1 = arith.mulf %0, %0 : vector<32x256xf32>
    %cst = arith.constant dense<0.000000e+00> : vector<256xf32>
    %2 = vector.multi_reduction <add>, %1, %cst [0] : vector<32x256xf32> to vector<256xf32>
    %3 = vector.shape_cast %2 : vector<256xf32> to vector<1x256xf32>
    %cst_1 = arith.constant 1.000000e-24 : f32
    %4 = vector.broadcast %cst_1 : f32 to vector<1x256xf32>
    %5 = arith.maximumf %3, %4 : vector<1x256xf32>
    %6 = math.rsqrt %5 : vector<1x256xf32>
    %7 = vector.broadcast %6 : vector<1x256xf32> to vector<32x256xf32>
    %8 = arith.mulf %0, %7 : vector<32x256xf32>
    %c0_2 = arith.constant 0 : index
    %c0_3 = arith.constant 0 : index
    %9 = vector.load %arg2[%c0_2, %c0_3] : memref<32x256xf32, #tpu.memory_space<vmem>>, vector<32x256xf32>
    tpu.vector_store %arg2[%c0_2, %c0_3], %8 {strides = array<i32>} : memref<32x256xf32, #tpu.memory_space<vmem>>, vector<32x256xf32>,
    return
  }
  func.func @transform_0(%arg0: i32) -> (i32, i32) {
    %c0_i32 = arith.constant 0 : i32
    %c0_i32_0 = arith.constant 0 : i32
    return %c0_i32, %arg0 : i32, i32
  }
  func.func @transform_1(%arg0: i32) -> (i32, i32) {
    %c0_i32 = arith.constant 0 : i32
    %c0_i32_0 = arith.constant 0 : i32
    return %c0_i32, %arg0 : i32, i32
  }
}

</mosaic_0001>

<llo_original>
// kernel: tpu_custom_call.1
$region0: #{tpu_custom_call.1}
  #allocation0 [shape = 'u32[]', space=smem, size = 0x4, offset = 0x4, fixed_abs, tag = 'smem constant byte address 0x4 - core index']
  #allocation1 [shape = 'u32[72,128]{1,0:T(1,128)}', space=vmem, size = 0x9000, scoped, tag = 'internal scratch']
  %s0 = inlined_call_operand.hbm [shape: f32[32,256], index: 0, kind: input, shape index: {}]
  %s1 = inlined_call_operand.hbm [shape: f32[32,256], index: 1, kind: output, shape index: {}]
  %s2 = sld [smem:[#allocation0]]
  $region18: #{tpu_custom_call.1} parent=0
    _
  %s4 = ssub.s32 1, %s2
  %s5 = scalar_select 0, %s4, %s2
  $region1: #{tpu_custom_call.1} parent=0
    #allocation2 [shape = 'u8[32768]{0}', space=vmem, size = 0x8000, scoped, tag = 'input window, operand 0, single buffered']
    #allocation3 [shape = 's32[1]{0}', space=sflag, size = 0x4, scoped, tag = 'scoped memory for tpu_custom_call.1']
    #allocation4 [shape = 's32[1]{0}', space=sflag, size = 0x4, scoped, tag = 'scoped memory for tpu_custom_call.1']
    #allocation5 [shape = 'u8[32768]{0}', space=vmem, size = 0x8000, scoped, tag = 'output window, operand 0, single buffered']
    %6 = vsyncpa [#allocation3], 0
    %7 = vsyncpa [#allocation4], 0
    // Predicated region
    $region2: #{tpu_custom_call.1} parent=1 // pred_check
      _
    $region3: #{tpu_custom_call.1} parent=1 // pred_check_branch
      %9 = sbr.rel (0) target = $region5
    $region4: #{tpu_custom_call.1} parent=1 // pred_region
      %11 = vsyncadd [#allocation3], 0
      %s12 = sshll.u32 %s0, 4
      %s13 = int_to_ptr.hbm [resolvable:$true] %s12
      %s14 = sshll.u32 [#allocation2], 4
      %s15 = int_to_ptr.vmem [resolvable:$true] %s14
      %20 = dma.hbm_to_vmem [thread:$0]  %s13, 1024, %s15, [#allocation3], 256, 256, 16
    $region5: #{tpu_custom_call.1} parent=1 // pred_fallthru
      _
    // Predicated region
    $region6: #{tpu_custom_call.1} parent=1 // pred_check
      _
    $region7: #{tpu_custom_call.1} parent=1 // pred_check_branch
      %22 = sbr.rel (0) target = $region9
    $region8: #{tpu_custom_call.1} parent=1 // pred_region
      %24 = dma.done [#allocation3], 1024
    $region9: #{tpu_custom_call.1} parent=1 // pred_fallthru
      _
    %v25 = vld [vmem:[#allocation2] sm:$0xff]
    %v26 = vld [vmem:[#allocation2 + $0x8] sm:$0xff]
    %v27 = vld [vmem:[#allocation2 + $0x10] sm:$0xff]
    %v28 = vld [vmem:[#allocation2 + $0x18] sm:$0xff]
    %v29 = vld [vmem:[#allocation2 + $0x20] sm:$0xff]
    %v30 = vld [vmem:[#allocation2 + $0x28] sm:$0xff]
    %v31 = vld [vmem:[#allocation2 + $0x30] sm:$0xff]
    %v32 = vld [vmem:[#allocation2 + $0x38] sm:$0xff]
    %v33 = vmul.f32 %v25, %v25
    %v34 = vmul.f32 %v26, %v26
    %v35 = vmul.f32 %v27, %v27
    %v36 = vmul.f32 %v28, %v28
    %v37 = vmul.f32 %v29, %v29
    %v38 = vmul.f32 %v30, %v30
    %v39 = vmul.f32 %v31, %v31
    %v40 = vmul.f32 %v32, %v32
    %v41 = vadd.f32 %v33, %v35
    %v42 = vadd.f32 %v41, %v37
    %v43 = vadd.f32 %v42, %v39
    %v44 = vrot.slane %v43, 4
    %v45 = vadd.f32 %v43, %v44
    %v46 = vrot.slane %v45, 2
    %v47 = vadd.f32 %v45, %v46
    %v48 = vrot.slane %v47, 1
    %v49 = vadd.f32 %v47, %v48
    %v50 = vadd.f32 %v34, %v36
    %v51 = vadd.f32 %v50, %v38
    %v52 = vadd.f32 %v51, %v40
    %v53 = vrot.slane %v52, 4
    %v54 = vadd.f32 %v52, %v53
    %v55 = vrot.slane %v54, 2
    %v56 = vadd.f32 %v54, %v55
    %v57 = vrot.slane %v56, 1
    %v58 = vadd.f32 %v56, %v57
    %v59 = vmax.f32 %v49, 1e-24
    %v60 = vmax.f32 %v58, 1e-24
    %v61 = vrsqrt.pop %v59
    %v62 = vmul.f32 %v61, %v59
    %v63 = vmul.f32 %v62, %v61
    %v64 = vmul.f32 0.5, %v63
    %v65 = vsub.f32 1.5, %v64
    %v66 = vmul.f32 %v61, %v65
    %vm67 = vweird.f32 %v59
    %vm68 = vweird.f32 %v61
    %vm69 = vmor %vm67, %vm68
    %v70 = vsel %vm69, %v61, %v66
    %v71 = vrsqrt.pop %v60
    %v72 = vmul.f32 %v71, %v60
    %v73 = vmul.f32 %v72, %v71
    %v74 = vmul.f32 0.5, %v73
    %v75 = vsub.f32 1.5, %v74
    %v76 = vmul.f32 %v71, %v75
    %vm77 = vweird.f32 %v60
    %vm78 = vweird.f32 %v71
    %vm79 = vmor %vm77, %vm78
    %v80 = vsel %vm79, %v71, %v76
    %v81 = vmul.f32 %v25, %v70
    %v82 = vmul.f32 %v26, %v80
    %v83 = vmul.f32 %v27, %v70
    %v84 = vmul.f32 %v28, %v80
    %v85 = vmul.f32 %v29, %v70
    %v86 = vmul.f32 %v30, %v80
    %v87 = vmul.f32 %v31, %v70
    %v88 = vmul.f32 %v32, %v80
    %89 = vst [vmem:[#allocation5] sm:$0xff] %v81
    %90 = vst [vmem:[#allocation5 + $0x8] sm:$0xff] %v82
    %91 = vst [vmem:[#allocation5 + $0x10] sm:$0xff] %v83
    %92 = vst [vmem:[#allocation5 + $0x18] sm:$0xff] %v84
    %93 = vst [vmem:[#allocation5 + $0x20] sm:$0xff] %v85
    %94 = vst [vmem:[#allocation5 + $0x28] sm:$0xff] %v86
    %95 = vst [vmem:[#allocation5 + $0x30] sm:$0xff] %v87
    %96 = vst [vmem:[#allocation5 + $0x38] sm:$0xff] %v88
    // Predicated region
    $region10: #{tpu_custom_call.1} parent=1 // pred_check
      _
    $region11: #{tpu_custom_call.1} parent=1 // pred_check_branch
      %98 = sbr.rel (0) target = $region13
    $region12: #{tpu_custom_call.1} parent=1 // pred_region
      %100 = vsyncadd [#allocation4], 0
      %s101 = sshll.u32 [#allocation5], 4
      %s102 = int_to_ptr.vmem [resolvable:$true] %s101
      %s103 = sshll.u32 %s1, 4
      %s104 = int_to_ptr.hbm [resolvable:$true] %s103
      %109 = dma.vmem_to_hbm [thread:$0]  %s102, 1024, %s104, [#allocation4], 256, 256, 16
    $region13: #{tpu_custom_call.1} parent=1 // pred_fallthru
      _
    // Predicated region
    $region14: #{tpu_custom_call.1} parent=1 // pred_check
      _
    $region15: #{tpu_custom_call.1} parent=1 // pred_check_branch
      %111 = sbr.rel (0) target = $region17
    $region16: #{tpu_custom_call.1} parent=1 // pred_region
      %113 = dma.done [#allocation4], 1024
    $region17: #{tpu_custom_call.1} parent=1 // pred_fallthru
      _
    %114 = vsyncpa [#allocation3], 1
    %115 = vsyncpa [#allocation4], 1

</llo_original>
